<compile_context>
chip_gen: v7x
topology: tpu7x:2x2x1
jax: 0.10.0
libtpu: 0.0.40
codegen_flags: <defaults>
</compile_context>

<pallas_src>
import jax
import jax.numpy as jnp
from jax.experimental import pallas as pl
from jax.experimental.pallas import tpu as pltpu


def _round_up(x, m):
    return ((x + m - 1) // m) * m


def _pick_tile(dim_pad, max_tile):
    """Largest multiple of 128 that divides dim_pad and is <= max_tile.

    dim_pad must itself be a multiple of 128, so 128 always qualifies.
    """
    n_blocks = dim_pad // 128
    best = 1
    for b in range(1, n_blocks + 1):
        if n_blocks % b == 0 and b * 128 <= max_tile:
            best = b
    return best * 128


# Double-buffered VMEM working-set budget and explicit scoped-VMEM limit.
# 24 MiB working set + 32 MiB limit is safe on v5e/v6e/v7x.
_VMEM_BUDGET = 24 * 1024 * 1024
_VMEM_LIMIT = 32 * 1024 * 1024


def _tile_vmem_bytes(tm, tn, tk):
    dens = 2 * tm * tk * 2      # bf16 density block, double buffered
    wgt = 2 * tk * tn * 2       # bf16 weight block, double buffered
    bias = 2 * tn * 4           # f32 bias block, double buffered
    out = 2 * tm * tn * 4       # f32 output/accumulator block, double buffered
    return dens + wgt + bias + out


def collapse_kernel(d_ref, w_ref, b_ref, o_ref):
    """One (tm, tn) output tile; grid axis 2 walks the contraction (dim) axis.

    The output block index is constant along axis 2, so o_ref stays resident in
    VMEM and doubles as the f32 accumulator (no scratch needed).
    """
    k = pl.program_id(2)

    @pl.when(k == 0)
    def _init():
        # Seed the accumulator with the broadcast bias (f32).
        o_ref[...] = jnp.broadcast_to(b_ref[...], o_ref.shape)

    o_ref[...] += jnp.dot(d_ref[...], w_ref[...],
                          preferred_element_type=jnp.float32)

    @pl.when(k == pl.num_programs(2) - 1)
    def _finalize():
        o_ref[...] = jnp.maximum(o_ref[...], 0.0) + jnp.float32(1e-10)


def prepare_collapse_params(weight, bias):
    """One-time param prep: transpose to (D, V), pad to multiples of 128, cast bf16.

    weight: (V, D) PyTorch nn.Linear layout; bias: (V,).
    Cache the returned dict across forward calls.
    """
    V, D = weight.shape
    D_pad = _round_up(D, 128)
    V_pad = _round_up(V, 128)

    w_t = jnp.zeros((D_pad, V_pad), jnp.bfloat16)
    w_t = w_t.at[:D, :V].set(weight.T.astype(jnp.bfloat16))
    b = jnp.zeros((1, V_pad), jnp.float32)
    b = b.at[:, :V].set(bias.reshape(1, V).astype(jnp.float32))
    return dict(w_t=w_t, b=b, dim=D, vocab=V)


def collapse_forward(x_real, x_imag, params, *, tm=None, tn=None, tk=None):
    """x_real/x_imag: (B, S, D) f32; params: output of prepare_collapse_params."""
    B, S, D = x_real.shape
    assert D == params["dim"], "input dim does not match prepared weights"
    V = params["vocab"]
    w_t, b = params["w_t"], params["b"]
    D_pad, V_pad = w_t.shape

    N = B * S
    # Row tile: up to 1024 (enough MXU work per step to amortize ~0.35us grid
    # overhead and give ~1024x weight-byte reuse on v6e/v7x); multiple of 16 so
    # bf16 density blocks are sublane-packed.
    if tm is None:
        tm = min(1024, _round_up(N, 16))
    N_pad = _round_up(N, tm)

    # Weight-resident fast path: keep the whole bf16 weight in VMEM when small.
    weight_bytes = D_pad * V_pad * 2
    if (tk is None and tn is None and weight_bytes <= 8 * 1024 * 1024
            and _tile_vmem_bytes(tm, V_pad, D_pad) <= _VMEM_BUDGET):
        tk, tn = D_pad, V_pad
    if tk is None:
        tk = _pick_tile(D_pad, 512)
    if tn is None:
        tn = _pick_tile(V_pad, 1024)

    # v7x has 2 TensorCores: ensure a "parallel" axis has >= 2 blocks when we can.
    if N_pad // tm == 1 and V_pad // tn < 2 and V_pad >= 256:
        tn = _pick_tile(V_pad, V_pad // 2)

    # Shrink tiles if the double-buffered working set exceeds the VMEM budget.
    while _tile_vmem_bytes(tm, tn, tk) > _VMEM_BUDGET:
        if tm >= max(tn, tk) and tm > 128:
            tm = max(128, _round_up(tm // 2, 16))
            N_pad = _round_up(N, tm)
        elif tn >= tk and tn > 128:
            tn = _pick_tile(V_pad, tn // 2)
        elif tk > 128:
            tk = _pick_tile(D_pad, tk // 2)
        else:
            break

    # Precompute density ONCE as bf16 (XLA fuses square+add+cast); only the
    # small bf16 array is padded.  Contraction-dim padding MUST be explicit
    # zeros; padded rows are sliced off below so their relu(bias)+eps content
    # never escapes.
    density = (x_real.astype(jnp.float32) ** 2 +
               x_imag.astype(jnp.float32) ** 2).astype(jnp.bfloat16)
    density = density.reshape(N, D)
    if N_pad != N or D_pad != D:
        density = jnp.pad(density, ((0, N_pad - N), (0, D_pad - D)))

    grid = (N_pad // tm, V_pad // tn, D_pad // tk)

    w_map = lambda i, j, k: (k, j)
    w_spec = pl.BlockSpec((tk, tn), w_map)
    if D_pad // tk > 1:
        # Deeper weight pipelining hides weight DMA behind short MXU steps on
        # v6e/v7x; fall back silently if this BlockSpec kwarg is unsupported.
        try:
            w_spec = pl.BlockSpec((tk, tn), w_map, pipeline_mode=pl.Buffered(3))
        except TypeError:
            w_spec = pl.BlockSpec((tk, tn), w_map)

    flops = 2 * N_pad * D_pad * V_pad
    bytes_accessed = (N_pad * D_pad * 2 + D_pad * V_pad * 2 +
                      V_pad * 4 + N_pad * V_pad * 4)

    out = pl.pallas_call(
        collapse_kernel,
        out_shape=jax.ShapeDtypeStruct((N_pad, V_pad), jnp.float32),
        grid_spec=pltpu.PrefetchScalarGridSpec(
            num_scalar_prefetch=0,
            grid=grid,
            in_specs=[
                pl.BlockSpec((tm, tk), lambda i, j, k: (i, k)),   # bf16 density
                w_spec,                                           # bf16 weight (D, V)
                pl.BlockSpec((1, tn), lambda i, j, k: (0, j)),    # f32 bias (1, V)
            ],
            out_specs=pl.BlockSpec((tm, tn), lambda i, j, k: (i, j)),
        ),
        compiler_params=pltpu.CompilerParams(
            dimension_semantics=("parallel", "parallel", "arbitrary"),
            vmem_limit_bytes=_VMEM_LIMIT,
        ),
        cost_estimate=pl.CostEstimate(
            flops=int(flops), transcendentals=0,
            bytes_accessed=int(bytes_accessed)),
    )(density, w_t, b)

    # Slice off padded rows (they contain relu(bias)+eps) and padded vocab cols.
    return out[:N, :V].reshape(B, S, V)


def _reference_f32(x_real, x_imag, weight, bias):
    density = x_real ** 2 + x_imag ** 2
    logits = jnp.einsum("bsd,vd->bsv", density, weight) + bias
    return jnp.maximum(logits, 0.0) + 1e-10


def _reference_bf16(x_real, x_imag, weight, bias):
    # Same numerics as the kernel: bf16 operands, f32 accumulation.
    density = (x_real ** 2 + x_imag ** 2).astype(jnp.bfloat16)
    w = weight.astype(jnp.bfloat16)
    logits = jnp.einsum("bsd,vd->bsv", density, w,
                        preferred_element_type=jnp.float32) + bias
    return jnp.maximum(logits, 0.0) + 1e-10


if __name__ == "__main__":
    # Small shapes: batch=2, seq=8, dim=32, vocab=64
    B, S, D, V = 2, 8, 32, 64

    key = jax.random.PRNGKey(0)
    k_re, k_im, k_w, k_b = jax.random.split(key, 4)

    x_real = jax.random.normal(k_re, (B, S, D), dtype=jnp.float32)
    x_imag = jax.random.normal(k_im, (B, S, D), dtype=jnp.float32)

    # Deterministic nn.Linear-style init (uniform in [-1/sqrt(D), 1/sqrt(D)]).
    bound = 1.0 / (D ** 0.5)
    weight = jax.random.uniform(k_w, (V, D), minval=-bound, maxval=bound,
                                dtype=jnp.float32)
    bias = jax.random.uniform(k_b, (V,), minval=-bound, maxval=bound,
                              dtype=jnp.float32)

    params = prepare_collapse_params(weight, bias)     # one-time prep (cacheable)
    out = collapse_forward(x_real, x_imag, params)
    out = jax.block_until_ready(out)

    assert out.shape == (B, S, V)

    # Tight check vs the matching bf16-operand / f32-accumulate reference.
    ref_bf16 = _reference_bf16(x_real, x_imag, weight, bias)
    assert jnp.allclose(out, ref_bf16, atol=1e-3, rtol=1e-3), \
        "mismatch vs bf16-operand reference"

    # Loose sanity check vs the pure-f32 PyTorch-equivalent reference.
    ref_f32 = _reference_f32(x_real, x_imag, weight, bias)
    assert jnp.allclose(out, ref_f32, atol=5e-2, rtol=5e-2), \
        "mismatch vs f32 reference (beyond expected bf16 error)"

    print("KERNEL_OK")
</pallas_src>

<mosaic_0001>
module attributes {stable_mosaic.version = 11 : i64} {
  func.func @collapse_kernel(%arg0: i32, %arg1: i32, %arg2: i32, %arg3: memref<16x128xbf16, #tpu.memory_space<vmem>>, %arg4: memref<128x128xbf16, #tpu.memory_space<vmem>>, %arg5: memref<1x128xf32, #tpu.memory_space<vmem>>, %arg6: memref<16x128xf32, #tpu.memory_space<vmem>>) attributes {dimension_semantics = [#tpu.dimension_semantics<parallel>, #tpu.dimension_semantics<parallel>, #tpu.dimension_semantics<arbitrary>], iteration_bounds = array<i64: 1, 1, 1>, scalar_prefetch = 0 : i64, scratch_operands = 0 : i64, tpu.core_type = #tpu.core_type<tc>, window_params = [{transform_indices = @transform_0, window_bounds = array<i64: 16, 128>}, {transform_indices = @transform_1, window_bounds = array<i64: 128, 128>}, {transform_indices = @transform_2, window_bounds = array<i64: 1, 128>}, {transform_indices = @transform_3, window_bounds = array<i64: 16, 128>}]} {
    %c0_i32 = arith.constant 0 : i32
    %0 = arith.cmpi eq, %arg2, %c0_i32 : i32
    %1 = arith.extui %0 : i1 to i32
    %c0_i32_0 = arith.constant 0 : i32
    %2 = arith.cmpi ne, %1, %c0_i32_0 : i32
    scf.if %2 {
      %c0_10 = arith.constant 0 : index
      %c0_11 = arith.constant 0 : index
      %12 = vector.load %arg5[%c0_10, %c0_11] : memref<1x128xf32, #tpu.memory_space<vmem>>, vector<1x128xf32>
      %13 = vector.shape_cast %12 : vector<1x128xf32> to vector<1x128xf32>
      %14 = vector.broadcast %13 : vector<1x128xf32> to vector<16x128xf32>
      %c0_12 = arith.constant 0 : index
      %c0_13 = arith.constant 0 : index
      %15 = vector.load %arg6[%c0_12, %c0_13] : memref<16x128xf32, #tpu.memory_space<vmem>>, vector<16x128xf32>
      tpu.vector_store %arg6[%c0_12, %c0_13], %14 {strides = array<i32>} : memref<16x128xf32, #tpu.memory_space<vmem>>, vector<16x128xf32>,
    } else {
    }
    %c0 = arith.constant 0 : index
    %c0_1 = arith.constant 0 : index
    %3 = vector.load %arg6[%c0, %c0_1] : memref<16x128xf32, #tpu.memory_space<vmem>>, vector<16x128xf32>
    %c0_2 = arith.constant 0 : index
    %c0_3 = arith.constant 0 : index
    %4 = vector.load %arg3[%c0_2, %c0_3] : memref<16x128xbf16, #tpu.memory_space<vmem>>, vector<16x128xbf16>
    %c0_4 = arith.constant 0 : index
    %c0_5 = arith.constant 0 : index
    %5 = vector.load %arg4[%c0_4, %c0_5] : memref<128x128xbf16, #tpu.memory_space<vmem>>, vector<128x128xbf16>
    %cst = arith.constant dense<0.000000e+00> : vector<16x128xf32>
    %6 = tpu.matmul %4, %5, %cst {dimension_numbers = #tpu.dot_dimension_numbers<[1], [0], [0], [1], [0, 0, 1, 1], [], []>} : vector<16x128xbf16>, vector<128x128xbf16>, vector<16x128xf32> -> vector<16x128xf32>
    %7 = arith.addf %3, %6 : vector<16x128xf32>
    %c0_6 = arith.constant 0 : index
    %c0_7 = arith.constant 0 : index
    %8 = vector.load %arg6[%c0_6, %c0_7] : memref<16x128xf32, #tpu.memory_space<vmem>>, vector<16x128xf32>
    tpu.vector_store %arg6[%c0_6, %c0_7], %7 {strides = array<i32>} : memref<16x128xf32, #tpu.memory_space<vmem>>, vector<16x128xf32>,
    %c0_i32_8 = arith.constant 0 : i32
    %9 = arith.cmpi eq, %arg2, %c0_i32_8 : i32
    %10 = arith.extui %9 : i1 to i32
    %c0_i32_9 = arith.constant 0 : i32
    %11 = arith.cmpi ne, %10, %c0_i32_9 : i32
    scf.if %11 {
      %c0_10 = arith.constant 0 : index
      %c0_11 = arith.constant 0 : index
      %12 = vector.load %arg6[%c0_10, %c0_11] : memref<16x128xf32, #tpu.memory_space<vmem>>, vector<16x128xf32>
      %cst_12 = arith.constant 0.000000e+00 : f32
      %13 = vector.broadcast %cst_12 : f32 to vector<16x128xf32>
      %14 = arith.maximumf %12, %13 : vector<16x128xf32>
      %cst_13 = arith.constant 1.000000e-10 : f32
      %15 = vector.broadcast %cst_13 : f32 to vector<16x128xf32>
      %16 = arith.addf %14, %15 : vector<16x128xf32>
      %c0_14 = arith.constant 0 : index
      %c0_15 = arith.constant 0 : index
      %17 = vector.load %arg6[%c0_14, %c0_15] : memref<16x128xf32, #tpu.memory_space<vmem>>, vector<16x128xf32>
      tpu.vector_store %arg6[%c0_14, %c0_15], %16 {strides = array<i32>} : memref<16x128xf32, #tpu.memory_space<vmem>>, vector<16x128xf32>,
    } else {
    }
    return
  }
  func.func @transform_0(%arg0: i32, %arg1: i32, %arg2: i32) -> (i32, i32) {
    %c0_i32 = arith.constant 0 : i32
    return %arg0, %arg2 : i32, i32
  }
  func.func @transform_1(%arg0: i32, %arg1: i32, %arg2: i32) -> (i32, i32) {
    %c0_i32 = arith.constant 0 : i32
    return %arg2, %arg1 : i32, i32
  }
  func.func @transform_2(%arg0: i32, %arg1: i32, %arg2: i32) -> (i32, i32) {
    %c0_i32 = arith.constant 0 : i32
    %c0_i32_0 = arith.constant 0 : i32
    return %c0_i32, %arg1 : i32, i32
  }
  func.func @transform_3(%arg0: i32, %arg1: i32, %arg2: i32) -> (i32, i32) {
    %c0_i32 = arith.constant 0 : i32
    return %arg0, %arg1 : i32, i32
  }
}

</mosaic_0001>

<llo_original>
// kernel: tpu_custom_call.1
$region0: #{tpu_custom_call.1}
  #allocation0 [shape = 'u32[]', space=smem, size = 0x4, offset = 0x4, fixed_abs, tag = 'smem constant byte address 0x4 - core index']
  #allocation1 [shape = 'u32[144,128]{1,0:T(1,128)}', space=vmem, size = 0x12000, scoped, tag = 'internal scratch']
  %s0 = inlined_call_operand.hbm [shape: bf16[16,128], index: 0, kind: input, shape index: {}]
  %s1 = inlined_call_operand.hbm [shape: bf16[128,128], index: 1, kind: input, shape index: {}]
  %s2 = inlined_call_operand.vmem [shape: f32[1,128], index: 2, kind: input, shape index: {}]
  %s3 = inlined_call_operand.hbm [shape: f32[16,128], index: 3, kind: output, shape index: {}]
  %s4 = sld [smem:[#allocation0]]
  $region38: #{tpu_custom_call.1} parent=0
    _
  %s6 = ssub.s32 1, %s4
  %s7 = scalar_select 0, %s6, %s4
  $region1: #{tpu_custom_call.1} parent=0
    #allocation2 [shape = 'u8[4096]{0}', space=vmem, size = 0x1000, scoped, tag = 'input window, operand 0, single buffered']
    #allocation3 [shape = 's32[1]{0}', space=sflag, size = 0x4, scoped, tag = 'scoped memory for tpu_custom_call.1']
    #allocation4 [shape = 's32[1]{0}', space=sflag, size = 0x4, scoped, tag = 'scoped memory for tpu_custom_call.1']
    #allocation5 [shape = 'u8[32768]{0}', space=vmem, size = 0x8000, scoped, tag = 'input window, operand 1, single buffered']
    #allocation6 [shape = 's32[1]{0}', space=sflag, size = 0x4, scoped, tag = 'scoped memory for tpu_custom_call.1']
    #allocation7 [shape = 'u8[8192]{0}', space=vmem, size = 0x2000, scoped, tag = 'output window, operand 0, single buffered']
    %8 = vsyncpa [#allocation3], 0
    %9 = vsyncpa [#allocation6], 0
    %10 = vsyncpa [#allocation4], 0
    // Predicated region
    $region2: #{tpu_custom_call.1} parent=1 // pred_check
      _
    $region3: #{tpu_custom_call.1} parent=1 // pred_check_branch
      %12 = sbr.rel (0) target = $region5
    $region4: #{tpu_custom_call.1} parent=1 // pred_region
      %s14 = ssub.s32 128, 128
      %15 = vsyncadd [#allocation3], %s14
      %s16 = sshll.u32 [#allocation2], 4
      %s17 = int_to_ptr.vmem [resolvable:$true] %s16
      %22 = dma.hbm_to_vmem [thread:$0]  %s0, 128, %s17, [#allocation3], 64, 64, 4
    $region5: #{tpu_custom_call.1} parent=1 // pred_fallthru
      _
    // Predicated region
    $region6: #{tpu_custom_call.1} parent=1 // pred_check
      _
    $region7: #{tpu_custom_call.1} parent=1 // pred_check_branch
      %24 = sbr.rel (0) target = $region9
    $region8: #{tpu_custom_call.1} parent=1 // pred_region
      %s26 = ssub.s32 1024, 1024
      %27 = vsyncadd [#allocation6], %s26
      %s28 = sshll.u32 [#allocation5], 4
      %s29 = int_to_ptr.vmem [resolvable:$true] %s28
      %34 = dma.hbm_to_vmem [thread:$0]  %s1, 1024, %s29, [#allocation6], 64, 64, 4
    $region9: #{tpu_custom_call.1} parent=1 // pred_fallthru
      _
    // Predicated region
    $region10: #{tpu_custom_call.1} parent=1 // pred_check
      _
    $region11: #{tpu_custom_call.1} parent=1 // pred_check_branch
      %36 = sbr.rel (0) target = $region13
    $region12: #{tpu_custom_call.1} parent=1 // pred_region
      _
    $region13: #{tpu_custom_call.1} parent=1 // pred_fallthru
      _
    // Predicated region
    $region14: #{tpu_custom_call.1} parent=1 // pred_check
      _
    $region15: #{tpu_custom_call.1} parent=1 // pred_check_branch
      %38 = sbr.rel (0) target = $region17
    $region16: #{tpu_custom_call.1} parent=1 // pred_region
      %39 = dma.done [#allocation3], 128
    $region17: #{tpu_custom_call.1} parent=1 // pred_fallthru
      _
    // Predicated region
    $region18: #{tpu_custom_call.1} parent=1 // pred_check
      _
    $region19: #{tpu_custom_call.1} parent=1 // pred_check_branch
      %41 = sbr.rel (0) target = $region21
    $region20: #{tpu_custom_call.1} parent=1 // pred_region
      %42 = dma.done [#allocation6], 1024
    $region21: #{tpu_custom_call.1} parent=1 // pred_fallthru
      _
    %p44 = scmp.eq.s32.totalorder 0, 0
    // Predicated region
    $region22: #{tpu_custom_call.1} parent=1 // pred_check
      %p45 = pneg %p44
    $region23: #{tpu_custom_call.1} parent=1 // pred_check_branch
      %47 = sbr.rel (%p45) target = $region25
    $region24: #{tpu_custom_call.1} parent=1 // pred_region
      %v48 = vld [vmem:[%s2] sm:$0x1]
      %v50 = vlaneseq
      %v51 = vshrl.u32 %v50, 7
      %v52 = vsub.s32 0, %v51
      %v53 = vrot.slane %v48, %v52
      %55 = vst [vmem:[#allocation7] sm:$0xff] %v53
      %56 = vst [vmem:[#allocation7 + $0x8] sm:$0xff] %v53
    $region25: #{tpu_custom_call.1} parent=1 // pred_fallthru
      _
    %v57 = vld [vmem:[#allocation7] sm:$0xff]
    %v58 = vld [vmem:[#allocation7 + $0x8] sm:$0xff]
    %v59 = vld [vmem:[#allocation2] sm:$0xf]
    %v60 = vld [vmem:[#allocation2 + $0x4] sm:$0xf]
    %v61 = vld [vmem:[#allocation5] sm:$0xf]
    %v62 = vld [vmem:[#allocation5 + $0x4] sm:$0xf]
    %v63 = vld [vmem:[#allocation5 + $0x8] sm:$0xf]
    %v64 = vld [vmem:[#allocation5 + $0xc] sm:$0xf]
    %v65 = vld [vmem:[#allocation5 + $0x10] sm:$0xf]
    %v66 = vld [vmem:[#allocation5 + $0x14] sm:$0xf]
    %v67 = vld [vmem:[#allocation5 + $0x18] sm:$0xf]
    %v68 = vld [vmem:[#allocation5 + $0x1c] sm:$0xf]
    %v69 = vld [vmem:[#allocation5 + $0x20] sm:$0xf]
    %v70 = vld [vmem:[#allocation5 + $0x24] sm:$0xf]
    %v71 = vld [vmem:[#allocation5 + $0x28] sm:$0xf]
    %v72 = vld [vmem:[#allocation5 + $0x2c] sm:$0xf]
    %v73 = vld [vmem:[#allocation5 + $0x30] sm:$0xf]
    %v74 = vld [vmem:[#allocation5 + $0x34] sm:$0xf]
    %v75 = vld [vmem:[#allocation5 + $0x38] sm:$0xf]
    %v76 = vld [vmem:[#allocation5 + $0x3c] sm:$0xf]
    %v79 = vunpack.c.l.b16 %v59
    %v80 = vunpack.c.l.b16 %v60
    %v81 = vpack.c.b16 %v80, %v79
    %v99 = vunpack.c.l.b16 %v61
    %v100 = vunpack.c.l.b16 %v62
    %v101 = vunpack.c.l.b16 %v63
    %v102 = vunpack.c.l.b16 %v64
    %v103 = vunpack.c.l.b16 %v65
    %v104 = vunpack.c.l.b16 %v66
    %v105 = vunpack.c.l.b16 %v67
    %v106 = vunpack.c.l.b16 %v68
    %v107 = vunpack.c.l.b16 %v69
    %v108 = vunpack.c.l.b16 %v70
    %v109 = vunpack.c.l.b16 %v71
    %v110 = vunpack.c.l.b16 %v72
    %v111 = vunpack.c.l.b16 %v73
    %v112 = vunpack.c.l.b16 %v74
    %v113 = vunpack.c.l.b16 %v75
    %v114 = vunpack.c.l.b16 %v76
    %v115 = vpack.c.b16 %v100, %v99
    %v116 = vpack.c.b16 %v102, %v101
    %v117 = vpack.c.b16 %v104, %v103
    %v118 = vpack.c.b16 %v106, %v105
    %v119 = vpack.c.b16 %v108, %v107
    %v120 = vpack.c.b16 %v110, %v109
    %v121 = vpack.c.b16 %v112, %v111
    %v122 = vpack.c.b16 %v114, %v113
    %131 = vmatprep.subr.bf16.mxu0 0
    %132 = vmatpush1.bf16.msra.mxu0 %v115
    %133 = vmatprep.subr.bf16.mxu0 0
    %134 = vmatpush1.bf16.msra.mxu0 %v116
    %135 = vmatprep.subr.bf16.mxu0 0
    %136 = vmatpush1.bf16.msra.mxu0 %v117
    %137 = vmatprep.subr.bf16.mxu0 0
    %138 = vmatpush1.bf16.msra.mxu0 %v118
    %139 = vmatprep.subr.bf16.mxu0 0
    %140 = vmatpush1.bf16.msra.mxu0 %v119
    %141 = vmatprep.subr.bf16.mxu0 0
    %142 = vmatpush1.bf16.msra.mxu0 %v120
    %143 = vmatprep.subr.bf16.mxu0 0
    %144 = vmatpush1.bf16.msra.mxu0 %v121
    %145 = vmatprep.subr.bf16.mxu0 0
    %146 = vmatpush1.bf16.msra.mxu0 %v122
    %147 = vmatprep.subr.bf16.mxu0 0
    %148 = vmatpush1.bf16.msra.mxu0 0
    %149 = vmatprep.subr.bf16.mxu0 0
    %150 = vmatpush1.bf16.msra.mxu0 0
    %151 = vmatprep.subr.bf16.mxu0 0
    %152 = vmatpush1.bf16.msra.mxu0 0
    %153 = vmatprep.subr.bf16.mxu0 0
    %154 = vmatpush1.bf16.msra.mxu0 0
    %155 = vmatprep.subr.bf16.mxu0 0
    %156 = vmatpush1.bf16.msra.mxu0 0
    %157 = vmatprep.subr.bf16.mxu0 0
    %158 = vmatpush1.bf16.msra.mxu0 0
    %159 = vmatprep.subr.bf16.mxu0 0
    %160 = vmatpush1.bf16.msra.mxu0 0
    %161 = vmatprep.subr.bf16.mxu0 0
    %162 = vmatpush1.bf16.msra.mxu0 0
    %163 = vmatprep.mubr.bf16.mxu0 0
    %164 = vmatmul.mubr.bf16.gmra.mrb[0].mxu0 %v81
    %v165 = vpop.f32.mrb[0].mxu0
    %v166 = vadd.f32 0.0, %v165
    %v167 = vpop.f32.mrb[0].mxu0
    %v168 = vpop.f32.mrb[0].mxu0
    %v169 = vadd.f32 0.0, %v168
    %v170 = vpop.f32.mrb[0].mxu0
    %171 = vdwg.mxu0
    %v172 = vadd.f32 %v57, %v166
    %v173 = vadd.f32 %v58, %v169
    %174 = vst [vmem:[#allocation7] sm:$0xff] %v172
    %175 = vst [vmem:[#allocation7 + $0x8] sm:$0xff] %v173
    // Predicated region
    $region26: #{tpu_custom_call.1} parent=1 // pred_check
      %p176 = pneg %p44
    $region27: #{tpu_custom_call.1} parent=1 // pred_check_branch
      %178 = sbr.rel (%p176) target = $region29
    $region28: #{tpu_custom_call.1} parent=1 // pred_region
      %v179 = vld [vmem:[#allocation7] sm:$0xff]
      %v180 = vld [vmem:[#allocation7 + $0x8] sm:$0xff]
      %v181 = vmax.f32 %v179, 0.0
      %v182 = vmax.f32 %v180, 0.0
      %v183 = vadd.f32 %v181, 1e-10
      %v184 = vadd.f32 %v182, 1e-10
      %185 = vst [vmem:[#allocation7] sm:$0xff] %v183
      %186 = vst [vmem:[#allocation7 + $0x8] sm:$0xff] %v184
    $region29: #{tpu_custom_call.1} parent=1 // pred_fallthru
      _
    // Predicated region
    $region30: #{tpu_custom_call.1} parent=1 // pred_check
      _
    $region31: #{tpu_custom_call.1} parent=1 // pred_check_branch
      %188 = sbr.rel (0) target = $region33
    $region32: #{tpu_custom_call.1} parent=1 // pred_region
      %s190 = ssub.s32 256, 256
      %191 = vsyncadd [#allocation4], %s190
      %s192 = sshll.u32 [#allocation7], 4
      %s193 = int_to_ptr.vmem [resolvable:$true] %s192
      %198 = dma.vmem_to_hbm [thread:$0]  %s193, 256, %s3, [#allocation4], 128, 128, 8
    $region33: #{tpu_custom_call.1} parent=1 // pred_fallthru
      _
    // Predicated region
    $region34: #{tpu_custom_call.1} parent=1 // pred_check
      _
    $region35: #{tpu_custom_call.1} parent=1 // pred_check_branch
      %200 = sbr.rel (0) target = $region37
    $region36: #{tpu_custom_call.1} parent=1 // pred_region
      %201 = dma.done [#allocation4], 256
    $region37: #{tpu_custom_call.1} parent=1 // pred_fallthru
      _
    %202 = vsyncpa [#allocation3], 1
    %203 = vsyncpa [#allocation6], 1
    %204 = vsyncpa [#allocation4], 1

</llo_original>
